<compile_context>
chip_gen: v7x
topology: tpu7x:2x2x1
jax: 0.10.0
libtpu: 0.0.40
codegen_flags: <defaults>
</compile_context>

<pallas_src>
import functools

import jax
import jax.numpy as jnp
from jax import lax
from jax.experimental import pallas as pl
from jax.experimental.pallas import tpu as pltpu


# ---------------------------------------------------------------------------
# PE table (identical math to the PyTorch __init__)
# ---------------------------------------------------------------------------
def _make_pe_table(d_model: int, max_len: int) -> jnp.ndarray:
    assert d_model % 2 == 0, "d_model must be even (same constraint as the torch code)"
    position = jnp.arange(max_len, dtype=jnp.float32)[:, None]          # (max_len, 1)
    two_i = jnp.arange(0, d_model, 2, dtype=jnp.float32)                # (d_model/2,)
    div_term = jnp.power(10000.0, two_i / d_model)                      # (d_model/2,)
    angles = position / div_term                                        # (max_len, d/2)
    sin = jnp.sin(angles)
    cos = jnp.cos(angles)
    # interleave: pe[:, 0::2] = sin, pe[:, 1::2] = cos
    pe = jnp.stack([sin, cos], axis=-1).reshape(max_len, d_model)
    return pe.astype(jnp.float32)


# ---------------------------------------------------------------------------
# In-kernel dropout helpers
# ---------------------------------------------------------------------------
def _mix32(x, seed):
    """Cheap stateless 32-bit mixer (lowbias32-style finalizer)."""
    x = x ^ seed
    x = (x ^ (x >> 16)) * jnp.uint32(0x7FEB352D)
    x = (x ^ (x >> 15)) * jnp.uint32(0x846CA68B)
    x = x ^ (x >> 16)
    return x


def _apply_dropout(y, p, thr, seed_ref, blk, use_hw_prng):
    """Inverted dropout on a block.  `blk` is the flattened grid-step index."""
    scale = jnp.asarray(1.0 / (1.0 - p), dtype=y.dtype)
    thr_u = jnp.uint32(thr)
    if use_hw_prng:
        # TODO(synk): hardware PRNG has no interpret-mode lowering; enable on real
        # chips (primarily a v7x training-path win where VALU becomes binding).
        pltpu.prng_seed(seed_ref[0] ^ blk)
        bits = pltpu.prng_random_bits(y.shape).astype(jnp.uint32)
    else:
        # Per-block seed on the scalar path (scalar ops are free next to VPU work).
        seed_u = seed_ref[0].astype(jnp.uint32) ^ (
            blk.astype(jnp.uint32) * jnp.uint32(0x9E3779B9))
        # In-block flat element index from int32 iotas (native TPU form).
        idx = lax.broadcasted_iota(jnp.int32, y.shape, y.ndim - 1)
        stride = y.shape[-1]
        for ax in range(y.ndim - 2, -1, -1):
            idx = idx + lax.broadcasted_iota(jnp.int32, y.shape, ax) * jnp.int32(stride)
            stride *= y.shape[ax]
        bits = _mix32(idx.astype(jnp.uint32), seed_u)
    keep = bits >= thr_u           # keep with probability (1 - p)
    return jnp.where(keep, y * scale, jnp.zeros_like(y))


# ---------------------------------------------------------------------------
# Kernels
# ---------------------------------------------------------------------------
def _pe_kernel_3d(p, training, thr, use_hw_prng, seed_ref, x_ref, pe_ref, o_ref):
    # x_ref/o_ref: (bb, ts, D) block; pe_ref: (ts, D) block (broadcast over batch).
    y = x_ref[...] + pe_ref[...][None, :, :]
    if training and p > 0.0:
        blk = pl.program_id(0) * pl.num_programs(1) + pl.program_id(1)
        y = _apply_dropout(y, p, thr, seed_ref, blk, use_hw_prng)
    o_ref[...] = y


def _pe_kernel_2d(p, training, thr, use_hw_prng, seed_ref, x_ref, pe_ref, o_ref):
    # x_ref/o_ref: (bt, S*D) block; pe_ref: (1, S*D) block (broadcast over rows).
    y = x_ref[...] + pe_ref[...]
    if training and p > 0.0:
        blk = pl.program_id(0)
        y = _apply_dropout(y, p, thr, seed_ref, blk, use_hw_prng)
    o_ref[...] = y


# ---------------------------------------------------------------------------
# Wrapper
# ---------------------------------------------------------------------------
def _pick_tile(n: int, unit: int, target: int) -> int:
    """Largest divisor of n that is a multiple of `unit` and <= target
    (falls back to the smallest such divisor). Assumes n % unit == 0."""
    divisors = [d for d in range(unit, n + 1, unit) if n % d == 0]
    under = [d for d in divisors if d <= max(target, unit)]
    return under[-1] if under else divisors[0]


def positional_encoding(x: jnp.ndarray,
                        pe_table: jnp.ndarray,
                        *,
                        p: float = 0.1,
                        training: bool = False,
                        seed: int = 0,
                        block_bytes: int = 2 * 1024 * 1024,
                        use_hw_prng: bool = False) -> jnp.ndarray:
    """x: (B, S, D); pe_table: (max_len, D). Returns dropout(x + pe[:S]) like the module."""
    B, S, D = x.shape
    assert pe_table.shape[1] == D and pe_table.shape[0] >= S
    itemsize = jnp.dtype(x.dtype).itemsize
    pe = pe_table[:S].astype(x.dtype)      # pre-cast once; smaller PE DMA, no per-block cast

    thr = min(int(round(float(p) * (2.0 ** 32))), 2 ** 32 - 1)
    seed_arr = jnp.array([seed], dtype=jnp.int32)

    if D % 128 == 0:
        # Lane-dense path: 2-D grid, seq-block OUTER / batch-block INNER so the PE
        # block index is constant across the inner loop and its DMA is not repeated.
        if S % 8 == 0:
            ts = _pick_tile(S, 8, max(8, block_bytes // (D * itemsize)))
        else:
            ts = S                          # full-extent second-minor dim is always legal
        bb = _pick_tile(B, 1, max(1, block_bytes // (ts * D * itemsize)))
        grid = (S // ts, B // bb)

        x_spec = pl.BlockSpec((bb, ts, D), lambda s, b, _seed: (b, s, 0))
        pe_spec = pl.BlockSpec((ts, D), lambda s, b, _seed: (s, 0))

        blk_bytes = bb * ts * D * itemsize
        pe_bytes = ts * D * itemsize
        vmem_need = 4 * blk_bytes + 2 * pe_bytes          # double-buffered x, out, pe
        vmem_limit = int(min(max(vmem_need + (2 << 20), 16 << 20), 48 << 20))

        kernel = functools.partial(_pe_kernel_3d, float(p), bool(training),
                                   thr, bool(use_hw_prng))
        out = pl.pallas_call(
            kernel,
            out_shape=jax.ShapeDtypeStruct((B, S, D), x.dtype),
            grid_spec=pltpu.PrefetchScalarGridSpec(
                num_scalar_prefetch=1,
                grid=grid,
                in_specs=[x_spec, pe_spec],
                out_specs=x_spec,
            ),
            compiler_params=pltpu.CompilerParams(
                dimension_semantics=("parallel", "parallel"),
                vmem_limit_bytes=vmem_limit),
        )(seed_arr, x, pe)
        return out

    # Folded-lane path (D not a multiple of 128, e.g. the demo D=32): fold S*D into
    # the lane axis so stores stay unmasked full-lane vst; PE is one resident (1, S*D)
    # block (constant index map -> DMA'd once).
    L = S * D
    x2 = x.reshape(B, L)
    pe2 = pe.reshape(1, L)

    pad = 0
    if B % 8 != 0 and B > 8:
        pad = (-B) % 8                      # keep blocks ~block_bytes instead of 1 huge block
        x2 = jnp.pad(x2, ((0, pad), (0, 0)))
    Bp = B + pad
    if Bp % 8 == 0:
        bt = _pick_tile(Bp, 8, max(8, block_bytes // (L * itemsize)))
    else:
        bt = Bp                             # tiny B (< 8): full-extent sublane dim is legal
    grid = (Bp // bt,)

    x_spec = pl.BlockSpec((bt, L), lambda i, _seed: (i, 0))
    pe_spec = pl.BlockSpec((1, L), lambda i, _seed: (0, 0))

    blk_bytes = bt * L * itemsize
    vmem_need = 4 * blk_bytes + 2 * L * itemsize
    vmem_limit = int(min(max(vmem_need + (2 << 20), 16 << 20), 48 << 20))

    kernel = functools.partial(_pe_kernel_2d, float(p), bool(training),
                               thr, bool(use_hw_prng))
    out2 = pl.pallas_call(
        kernel,
        out_shape=jax.ShapeDtypeStruct((Bp, L), x.dtype),
        grid_spec=pltpu.PrefetchScalarGridSpec(
            num_scalar_prefetch=1,
            grid=grid,
            in_specs=[x_spec, pe_spec],
            out_specs=x_spec,
        ),
        compiler_params=pltpu.CompilerParams(
            dimension_semantics=("parallel",),
            vmem_limit_bytes=vmem_limit),
    )(seed_arr, x2, pe2)

    if pad:
        out2 = out2[:B]
    return out2.reshape(B, S, D)


# ---------------------------------------------------------------------------
# Demo / self-test
# ---------------------------------------------------------------------------
if __name__ == "__main__":
    key = jax.random.PRNGKey(0)
    k_a, k_b = jax.random.split(key)
    p = 0.1

    # --- Case 1: module-like small shapes (B=2, S=8, d_model=32) -> folded-lane path ---
    B, S, D = 2, 8, 32
    max_len = 64
    x = jax.random.normal(k_a, (B, S, D), dtype=jnp.float32)
    pe_table = _make_pe_table(D, max_len)

    out = jax.block_until_ready(positional_encoding(x, pe_table, p=p, training=False))
    ref = x + pe_table[None, :S, :]
    assert out.shape == (B, S, D)
    assert jnp.allclose(out, ref, atol=1e-6, rtol=1e-6)

    # Training / dropout path: every surviving element must equal ref/(1-p).
    out_tr = jax.block_until_ready(
        positional_encoding(x, pe_table, p=p, training=True, seed=123))
    scaled = ref / (1.0 - p)
    ok = jnp.logical_or(out_tr == 0.0,
                        jnp.isclose(out_tr, scaled, atol=1e-5, rtol=1e-5))
    assert bool(jnp.all(ok))
    frac_dropped = float(jnp.mean((out_tr == 0.0).astype(jnp.float32)))
    assert 0.0 < frac_dropped < 0.4, frac_dropped

    # --- Case 2: lane-dense path (D multiple of 128) -> (seq, batch) 2-D grid ---
    B2, S2, D2 = 2, 16, 128
    x2 = jax.random.normal(k_b, (B2, S2, D2), dtype=jnp.float32)
    pe_table2 = _make_pe_table(D2, 32)
    out2 = jax.block_until_ready(positional_encoding(x2, pe_table2, p=p, training=False))
    ref2 = x2 + pe_table2[None, :S2, :]
    assert out2.shape == (B2, S2, D2)
    assert jnp.allclose(out2, ref2, atol=1e-6, rtol=1e-6)

    # Training mode on the lane-dense path as well.
    out2_tr = jax.block_until_ready(
        positional_encoding(x2, pe_table2, p=p, training=True, seed=7))
    scaled2 = ref2 / (1.0 - p)
    ok2 = jnp.logical_or(out2_tr == 0.0,
                         jnp.isclose(out2_tr, scaled2, atol=1e-5, rtol=1e-5))
    assert bool(jnp.all(ok2))

    print("KERNEL_OK")
</pallas_src>

<mosaic_0001>
module attributes {stable_mosaic.version = 11 : i64} {
  func.func @_pe_kernel_2d(%arg0: i32, %arg1: memref<1xi32, #tpu.memory_space<smem>>, %arg2: memref<2x256xf32, #tpu.memory_space<vmem>>, %arg3: memref<1x256xf32, #tpu.memory_space<vmem>>, %arg4: memref<2x256xf32, #tpu.memory_space<vmem>>) attributes {dimension_semantics = [#tpu.dimension_semantics<parallel>], iteration_bounds = array<i64: 1>, scalar_prefetch = 1 : i64, scratch_operands = 0 : i64, tpu.core_type = #tpu.core_type<tc>, window_params = [{transform_indices = @transform_0, window_bounds = array<i64: 2, 256>}, {pipeline_mode = #tpu.pipeline_mode<synchronous>, transform_indices = @transform_1, window_bounds = array<i64: 1, 256>}, {transform_indices = @transform_2, window_bounds = array<i64: 2, 256>}]} {
    %c0 = arith.constant 0 : index
    %c0_0 = arith.constant 0 : index
    %0 = vector.load %arg2[%c0, %c0_0] : memref<2x256xf32, #tpu.memory_space<vmem>>, vector<2x256xf32>
    %c0_1 = arith.constant 0 : index
    %c0_2 = arith.constant 0 : index
    %1 = vector.load %arg3[%c0_1, %c0_2] : memref<1x256xf32, #tpu.memory_space<vmem>>, vector<1x256xf32>
    %2 = vector.broadcast %1 : vector<1x256xf32> to vector<2x256xf32>
    %3 = arith.addf %0, %2 : vector<2x256xf32>
    %c0_3 = arith.constant 0 : index
    %c0_4 = arith.constant 0 : index
    %4 = vector.load %arg4[%c0_3, %c0_4] : memref<2x256xf32, #tpu.memory_space<vmem>>, vector<2x256xf32>
    tpu.vector_store %arg4[%c0_3, %c0_4], %3 {strides = array<i32>} : memref<2x256xf32, #tpu.memory_space<vmem>>, vector<2x256xf32>,
    return
  }
  func.func @transform_0(%arg0: i32, %arg1: memref<1xi32, #tpu.memory_space<smem>>) -> (i32, i32) {
    %c0_i32 = arith.constant 0 : i32
    %c0_i32_0 = arith.constant 0 : i32
    return %arg0, %c0_i32 : i32, i32
  }
  func.func @transform_1(%arg0: i32, %arg1: memref<1xi32, #tpu.memory_space<smem>>) -> (i32, i32) {
    %c0_i32 = arith.constant 0 : i32
    %c0_i32_0 = arith.constant 0 : i32
    %c0_i32_1 = arith.constant 0 : i32
    return %c0_i32, %c0_i32_0 : i32, i32
  }
  func.func @transform_2(%arg0: i32, %arg1: memref<1xi32, #tpu.memory_space<smem>>) -> (i32, i32) {
    %c0_i32 = arith.constant 0 : i32
    %c0_i32_0 = arith.constant 0 : i32
    return %arg0, %c0_i32 : i32, i32
  }
}

</mosaic_0001>

<llo_original>
// kernel: tpu_custom_call.1
$region0: #{tpu_custom_call.1}
  #allocation0 [shape = 'u32[]', space=smem, size = 0x4, offset = 0x4, fixed_abs, tag = 'smem constant byte address 0x4 - core index']
  #allocation1 [shape = 'u32[144,128]{1,0:T(1,128)}', space=vmem, size = 0x12000, scoped, tag = 'internal scratch']
  #allocation2 [shape = 's32[1]{0}', space=sflag, size = 0x4, scoped, tag = 'scoped memory for tpu_custom_call.1']
  #allocation3 [shape = 's32[1]{0:T(128)S(6)}', space=smem, size = 0x200, scoped, tag = 'prefetched SMEM operand 0']
  %s0 = inlined_call_operand.<no memory space> [shape: s32[1], index: 0, kind: input, shape index: {}]
  %s1 = inlined_call_operand.hbm [shape: f32[2,256], index: 1, kind: input, shape index: {}]
  %s2 = inlined_call_operand.vmem [shape: f32[1,256], index: 2, kind: input, shape index: {}]
  %s3 = inlined_call_operand.hbm [shape: f32[2,256], index: 3, kind: output, shape index: {}]
  %s4 = sld [smem:[#allocation0]]
  $region22: #{tpu_custom_call.1} parent=0
    _
  %s6 = ssub.s32 1, %s4
  %s7 = scalar_select 0, %s6, %s4
  %8 = sst [smem:[#allocation3]] %s0
  $region1: #{tpu_custom_call.1} parent=0
    #allocation4 [shape = 'u8[2048]{0}', space=vmem, size = 0x800, scoped, tag = 'input window, operand 1, single buffered']
    #allocation5 [shape = 's32[1]{0}', space=sflag, size = 0x4, scoped, tag = 'scoped memory for tpu_custom_call.1']
    #allocation6 [shape = 's32[1]{0}', space=sflag, size = 0x4, scoped, tag = 'scoped memory for tpu_custom_call.1']
    #allocation7 [shape = 'u8[2048]{0}', space=vmem, size = 0x800, scoped, tag = 'output window, operand 0, single buffered']
    %9 = vsyncpa [#allocation5], 0
    %10 = vsyncpa [#allocation6], 0
    // Predicated region
    $region2: #{tpu_custom_call.1} parent=1 // pred_check
      _
    $region3: #{tpu_custom_call.1} parent=1 // pred_check_branch
      %12 = sbr.rel (0) target = $region5
    $region4: #{tpu_custom_call.1} parent=1 // pred_region
      %s14 = ssub.s32 64, 64
      %15 = vsyncadd [#allocation5], %s14
      %s17 = sshll.u32 [#allocation4], 4
      %s18 = int_to_ptr.vmem [resolvable:$true] %s17
      %20 = dma.hbm_to_vmem [thread:$0]  %s1, 64, %s18, [#allocation5]
    $region5: #{tpu_custom_call.1} parent=1 // pred_fallthru
      _
    // Predicated region
    $region6: #{tpu_custom_call.1} parent=1 // pred_check
      _
    $region7: #{tpu_custom_call.1} parent=1 // pred_check_branch
      %22 = sbr.rel (0) target = $region9
    $region8: #{tpu_custom_call.1} parent=1 // pred_region
      _
    $region9: #{tpu_custom_call.1} parent=1 // pred_fallthru
      _
    // Predicated region
    $region10: #{tpu_custom_call.1} parent=1 // pred_check
      _
    $region11: #{tpu_custom_call.1} parent=1 // pred_check_branch
      %24 = sbr.rel (0) target = $region13
    $region12: #{tpu_custom_call.1} parent=1 // pred_region
      %25 = dma.done [#allocation5], 64
    $region13: #{tpu_custom_call.1} parent=1 // pred_fallthru
      _
    %v26 = vld [vmem:[#allocation4] sm:$0xf]
    %v27 = vld [vmem:[%s2] sm:$0x3]
    %v29 = vlaneseq
    %v30 = vshrl.u32 %v29, 7
    %v31 = vsub.s32 0, %v30
    %v32 = vrot.slane %v27, %v31
    %v33 = vlaneseq
    %v34 = vshrl.u32 %v33, 7
    %v35 = vsub.s32 1, %v34
    %v36 = vrot.slane %v27, %v35
    %v37 = vcombine.low %v32, %v36
    %v39 = vunpack.c.l.s4 1983009808
    %v40 = vunpack.c.0.s8 %v39
    %v41 = vlaneseq
    %v42 = vshrl.u32 %v41, 7
    %v43 = vsub.s32 %v40, %v42
    %v44 = vrot.slane %v37, %v43
    %v46 = vadd.f32 %v26, %v44
    %47 = vst [vmem:[#allocation7] sm:$0xf] %v46
    // Predicated region
    $region14: #{tpu_custom_call.1} parent=1 // pred_check
      _
    $region15: #{tpu_custom_call.1} parent=1 // pred_check_branch
      %49 = sbr.rel (0) target = $region17
    $region16: #{tpu_custom_call.1} parent=1 // pred_region
      %s51 = ssub.s32 64, 64
      %52 = vsyncadd [#allocation6], %s51
      %s54 = sshll.u32 [#allocation7], 4
      %s55 = int_to_ptr.vmem [resolvable:$true] %s54
      %57 = dma.vmem_to_hbm [thread:$0]  %s55, 64, %s3, [#allocation6]
    $region17: #{tpu_custom_call.1} parent=1 // pred_fallthru
      _
    // Predicated region
    $region18: #{tpu_custom_call.1} parent=1 // pred_check
      _
    $region19: #{tpu_custom_call.1} parent=1 // pred_check_branch
      %59 = sbr.rel (0) target = $region21
    $region20: #{tpu_custom_call.1} parent=1 // pred_region
      %60 = dma.done [#allocation6], 64
    $region21: #{tpu_custom_call.1} parent=1 // pred_fallthru
      _
    %61 = vsyncpa [#allocation5], 1
    %62 = vsyncpa [#allocation6], 1

</llo_original>
